<compile_context>
chip_gen: v7x
topology: tpu7x:2x2x1
jax: 0.10.0
libtpu: 0.0.40
codegen_flags: <defaults>
</compile_context>

<pallas_src>
import functools

import jax
import jax.numpy as jnp
from jax import lax
from jax.experimental import pallas as pl
from jax.experimental.pallas import tpu as pltpu  # noqa: F401  (TPU backend)


# ----------------------------- model config ---------------------------------
STATE_DIM = 12
NUM_SPECIES = 4
HIDDEN_SIZE = 128          # = lane width; keeps every matmul MXU-friendly
N_HIDDEN = 2
ACTION_DIM = 8
MAX_ACTION = 2.0
BATCH = 8

IN_DIM = STATE_DIM + NUM_SPECIES
N_LAYERS = N_HIDDEN + 2    # in_layer + hidden layers + out_layer
H = HIDDEN_SIZE


# ------------------------------- kernel -------------------------------------
def _actor_kernel(sid_ref, x_ref, w_ref, b_ref, o_ref, *,
                  state_dim, n_hidden, max_action):
    """Fused SpeciesActor forward.

    sid_ref : [B, 1]     int32   species id per row
    x_ref   : [B, S]     f32     state
    w_ref   : [L, H, H]  bf16    packed weights:
                layer 0, rows [0:S)            -> W_state
                layer 0, rows [S:S+NUM_SPECIES)-> W_species (hit by one-hot)
                layers 1..n_hidden             -> hidden-layer weights
                layer L-1, cols [0:A)          -> W_out (remaining cols zero)
    b_ref   : [L, 1, H]  f32     packed biases (b_out zero-padded to H lanes)
    o_ref   : [B, H]     f32     lane-dense output; cols [0:A) hold the action
    """
    B = x_ref.shape[0]

    # ---- fused one-hot over the full 128-lane slab --------------------------
    # one_hot[b, c] = 1 iff c == state_dim + species_id[b]
    sid = sid_ref[...]                                         # [B, 1] int32
    col = lax.broadcasted_iota(jnp.int32, (B, H), 1)           # [B, H]
    one_hot = jnp.where(col == sid + state_dim, 1.0, 0.0)      # [B, H] f32
    one_hot = one_hot.astype(jnp.bfloat16)

    # ---- layer 0: Linear(cat(state, one_hot)) + ReLU ------------------------
    # state part: x @ W_state  (rows [0:state_dim) of slab layer 0)
    # species part: one_hot @ slab[0]  (only rows [state_dim:state_dim+n_sp)
    # can be hit because one_hot is zero elsewhere; rows >= IN_DIM are zero)
    x = x_ref[...].astype(jnp.bfloat16)                        # [B, S] bf16
    h = jnp.dot(x, w_ref[0, :state_dim, :],
                preferred_element_type=jnp.float32)
    h = h + jnp.dot(one_hot, w_ref[0],
                    preferred_element_type=jnp.float32)
    h = jnp.maximum(h + b_ref[0], 0.0)                         # f32 VPU work

    # ---- hidden layers (statically unrolled) --------------------------------
    for i in range(n_hidden):
        h = jnp.dot(h.astype(jnp.bfloat16), w_ref[1 + i],
                    preferred_element_type=jnp.float32)
        h = jnp.maximum(h + b_ref[1 + i], 0.0)

    # ---- out layer: Linear -> tanh -> * max_action --------------------------
    z = jnp.dot(h.astype(jnp.bfloat16), w_ref[1 + n_hidden],
                preferred_element_type=jnp.float32)
    o_ref[...] = (jnp.tanh(z + b_ref[1 + n_hidden]) * max_action
                  ).astype(o_ref.dtype)


# ------------------------------- wrapper -------------------------------------
def species_actor_forward(x, species_id, packed_params):
    """x: [B, state_dim] f32, species_id: [B] int -> [B, action_dim] f32."""
    w_slab, b_slab = packed_params
    B = x.shape[0]
    sid = species_id.reshape(B, 1).astype(jnp.int32)

    kernel = functools.partial(_actor_kernel, state_dim=STATE_DIM,
                               n_hidden=N_HIDDEN, max_action=MAX_ACTION)

    # Single invocation, no grid: every operand is a whole-array VMEM ref
    # (total resident data ~150 KB, far under any VMEM limit).  Output is a
    # lane-dense (B, 128) slab; slice the real actions in the wrapper.
    out_padded = pl.pallas_call(
        kernel,
        out_shape=jax.ShapeDtypeStruct((B, H), jnp.float32),
    )(sid, x, w_slab, b_slab)
    return out_padded[:, :ACTION_DIM]

# TODO(synk): for real throughput, batch many env instances (B >= 128/256) and
# add a "parallel" batch grid axis (uses both v7x TensorCores); B=8 here keeps
# the demo small.


# --------------------------- parameter init / packing ------------------------
def init_params(key):
    """Deterministic Xavier-uniform weights, zero biases (mirrors weights_init_)."""
    def xavier(key, fan_in, fan_out):
        limit = jnp.sqrt(6.0 / (fan_in + fan_out))
        return jax.random.uniform(key, (fan_in, fan_out), jnp.float32,
                                  minval=-limit, maxval=limit)

    keys = jax.random.split(key, 2 + N_HIDDEN)
    w_in = xavier(keys[0], IN_DIM, HIDDEN_SIZE)
    b_in = jnp.zeros((1, HIDDEN_SIZE), jnp.float32)
    w_h = jnp.stack([xavier(keys[1 + i], HIDDEN_SIZE, HIDDEN_SIZE)
                     for i in range(N_HIDDEN)], axis=0)
    b_h = jnp.zeros((N_HIDDEN, 1, HIDDEN_SIZE), jnp.float32)
    w_out = xavier(keys[1 + N_HIDDEN], HIDDEN_SIZE, ACTION_DIM)
    b_out = jnp.zeros((1, ACTION_DIM), jnp.float32)
    return (w_in, b_in, w_h, b_h, w_out, b_out)


def pack_params(w_in, b_in, w_h, b_h, w_out, b_out):
    """Pack natural-layout f32 params into the two kernel slabs.

    Returns (w_slab bf16 [L, H, H], b_slab f32 [L, 1, H]).
    Done once at init time (not per call).
    """
    w_slab = jnp.zeros((N_LAYERS, H, H), jnp.float32)
    w_slab = w_slab.at[0, :IN_DIM, :].set(w_in)
    w_slab = w_slab.at[1:1 + N_HIDDEN].set(w_h)
    w_slab = w_slab.at[N_LAYERS - 1, :, :ACTION_DIM].set(w_out)

    b_slab = jnp.zeros((N_LAYERS, 1, H), jnp.float32)
    b_slab = b_slab.at[0].set(b_in)
    b_slab = b_slab.at[1:1 + N_HIDDEN].set(b_h)
    b_slab = b_slab.at[N_LAYERS - 1, :, :ACTION_DIM].set(b_out)
    return w_slab.astype(jnp.bfloat16), b_slab


# ------------------------- pure-JAX references --------------------------------
def reference_forward_packed(x, species_id, w_slab, b_slab):
    """Matched-precision reference (same bf16-weight / f32-accumulate math)."""
    one_hot = jax.nn.one_hot(species_id.reshape(-1), NUM_SPECIES,
                             dtype=jnp.float32)
    h = jnp.concatenate([x, one_hot], axis=-1)
    h = jnp.pad(h, ((0, 0), (0, H - IN_DIM)))
    for l in range(N_LAYERS - 1):
        z = jnp.dot(h.astype(jnp.bfloat16), w_slab[l],
                    preferred_element_type=jnp.float32) + b_slab[l]
        h = jnp.maximum(z, 0.0)
    z = jnp.dot(h.astype(jnp.bfloat16), w_slab[-1],
                preferred_element_type=jnp.float32) + b_slab[-1]
    return (jnp.tanh(z) * MAX_ACTION)[:, :ACTION_DIM]


def reference_forward_f32(x, species_id, params):
    """Full-f32 reference of the original PyTorch semantics."""
    w_in, b_in, w_h, b_h, w_out, b_out = params
    one_hot = jax.nn.one_hot(species_id.reshape(-1), NUM_SPECIES, dtype=x.dtype)
    h = jnp.concatenate([x, one_hot], axis=-1)
    h = jnp.maximum(h @ w_in + b_in, 0.0)
    for i in range(N_HIDDEN):
        h = jnp.maximum(h @ w_h[i] + b_h[i], 0.0)
    return jnp.tanh(h @ w_out + b_out) * MAX_ACTION


# ---------------------------------- main --------------------------------------
if __name__ == "__main__":
    root = jax.random.PRNGKey(0)
    k_param, k_x, k_sid = jax.random.split(root, 3)

    params = init_params(k_param)
    packed = pack_params(*params)

    x = jax.random.normal(k_x, (BATCH, STATE_DIM), jnp.float32)
    species_id = jax.random.randint(k_sid, (BATCH,), 0, NUM_SPECIES, jnp.int32)

    fwd = jax.jit(species_actor_forward)
    out = jax.block_until_ready(fwd(x, species_id, packed))

    ref_bf16 = reference_forward_packed(x, species_id, *packed)
    ref_f32 = reference_forward_f32(x, species_id, params)

    assert out.shape == (BATCH, ACTION_DIM)
    assert jnp.allclose(out, ref_bf16, atol=1e-2, rtol=1e-2), \
        "mismatch vs matched-precision reference"
    assert jnp.allclose(out, ref_f32, atol=1e-1, rtol=1e-1), \
        "mismatch vs f32 reference"

    print("KERNEL_OK")
</pallas_src>

<mosaic_0001>
module attributes {stable_mosaic.version = 11 : i64} {
  func.func @_actor_kernel(%arg0: memref<8x1xi32, #tpu.memory_space<vmem>>, %arg1: memref<8x12xf32, #tpu.memory_space<vmem>>, %arg2: memref<4x128x128xbf16, #tpu.memory_space<vmem>>, %arg3: memref<4x1x128xf32, #tpu.memory_space<vmem>>, %arg4: memref<8x128xf32, #tpu.memory_space<vmem>>) attributes {dimension_semantics = [], scalar_prefetch = 0 : i64, scratch_operands = 0 : i64, tpu.core_type = #tpu.core_type<tc>} {
    %c0 = arith.constant 0 : index
    %c0_0 = arith.constant 0 : index
    %0 = vector.load %arg0[%c0, %c0_0] : memref<8x1xi32, #tpu.memory_space<vmem>>, vector<8x1xi32>
    %1 = tpu.iota {dimensions = array<i32: 1>} : vector<8x128xi32>
    %c12_i32 = arith.constant 12 : i32
    %2 = vector.broadcast %c12_i32 : i32 to vector<8x1xi32>
    %3 = arith.addi %0, %2 : vector<8x1xi32>
    %4 = vector.broadcast %3 : vector<8x1xi32> to vector<8x128xi32>
    %5 = arith.cmpi eq, %1, %4 : vector<8x128xi32>
    %cst = arith.constant 1.000000e+00 : f32
    %cst_1 = arith.constant 0.000000e+00 : f32
    %6 = vector.broadcast %cst : f32 to vector<8x128xf32>
    %7 = vector.broadcast %cst_1 : f32 to vector<8x128xf32>
    %8 = arith.select %5, %6, %7 : vector<8x128xi1>, vector<8x128xf32>
    %9 = arith.truncf %8 : vector<8x128xf32> to vector<8x128xbf16>
    %c0_2 = arith.constant 0 : index
    %c0_3 = arith.constant 0 : index
    %10 = vector.load %arg1[%c0_2, %c0_3] : memref<8x12xf32, #tpu.memory_space<vmem>>, vector<8x12xf32>
    %11 = arith.truncf %10 : vector<8x12xf32> to vector<8x12xbf16>
    %c0_4 = arith.constant 0 : index
    %c0_5 = arith.constant 0 : index
    %c0_6 = arith.constant 0 : index
    %12 = vector.load %arg2[%c0_4, %c0_5, %c0_6] : memref<4x128x128xbf16, #tpu.memory_space<vmem>>, vector<1x12x128xbf16>
    %13 = vector.shape_cast %12 : vector<1x12x128xbf16> to vector<12x128xbf16>
    %cst_7 = arith.constant dense<0.000000e+00> : vector<8x128xf32>
    %14 = tpu.matmul %11, %13, %cst_7 {dimension_numbers = #tpu.dot_dimension_numbers<[1], [0], [0], [1], [0, 0, 1, 1], [], []>} : vector<8x12xbf16>, vector<12x128xbf16>, vector<8x128xf32> -> vector<8x128xf32>
    %c0_8 = arith.constant 0 : index
    %c0_9 = arith.constant 0 : index
    %c0_10 = arith.constant 0 : index
    %15 = vector.load %arg2[%c0_8, %c0_9, %c0_10] : memref<4x128x128xbf16, #tpu.memory_space<vmem>>, vector<1x128x128xbf16>
    %16 = vector.shape_cast %15 : vector<1x128x128xbf16> to vector<128x128xbf16>
    %cst_11 = arith.constant dense<0.000000e+00> : vector<8x128xf32>
    %17 = tpu.matmul %9, %16, %cst_11 {dimension_numbers = #tpu.dot_dimension_numbers<[1], [0], [0], [1], [0, 0, 1, 1], [], []>} : vector<8x128xbf16>, vector<128x128xbf16>, vector<8x128xf32> -> vector<8x128xf32>
    %18 = arith.addf %14, %17 : vector<8x128xf32>
    %c0_12 = arith.constant 0 : index
    %c0_13 = arith.constant 0 : index
    %c0_14 = arith.constant 0 : index
    %19 = vector.load %arg3[%c0_12, %c0_13, %c0_14] : memref<4x1x128xf32, #tpu.memory_space<vmem>>, vector<1x1x128xf32>
    %20 = vector.shape_cast %19 : vector<1x1x128xf32> to vector<1x128xf32>
    %21 = vector.broadcast %20 : vector<1x128xf32> to vector<8x128xf32>
    %22 = arith.addf %18, %21 : vector<8x128xf32>
    %cst_15 = arith.constant 0.000000e+00 : f32
    %23 = vector.broadcast %cst_15 : f32 to vector<8x128xf32>
    %24 = arith.maximumf %22, %23 : vector<8x128xf32>
    %25 = arith.truncf %24 : vector<8x128xf32> to vector<8x128xbf16>
    %c1 = arith.constant 1 : index
    %c0_16 = arith.constant 0 : index
    %c0_17 = arith.constant 0 : index
    %26 = vector.load %arg2[%c1, %c0_16, %c0_17] : memref<4x128x128xbf16, #tpu.memory_space<vmem>>, vector<1x128x128xbf16>
    %27 = vector.shape_cast %26 : vector<1x128x128xbf16> to vector<128x128xbf16>
    %cst_18 = arith.constant dense<0.000000e+00> : vector<8x128xf32>
    %28 = tpu.matmul %25, %27, %cst_18 {dimension_numbers = #tpu.dot_dimension_numbers<[1], [0], [0], [1], [0, 0, 1, 1], [], []>} : vector<8x128xbf16>, vector<128x128xbf16>, vector<8x128xf32> -> vector<8x128xf32>
    %c1_19 = arith.constant 1 : index
    %c0_20 = arith.constant 0 : index
    %c0_21 = arith.constant 0 : index
    %29 = vector.load %arg3[%c1_19, %c0_20, %c0_21] : memref<4x1x128xf32, #tpu.memory_space<vmem>>, vector<1x1x128xf32>
    %30 = vector.shape_cast %29 : vector<1x1x128xf32> to vector<1x128xf32>
    %31 = vector.broadcast %30 : vector<1x128xf32> to vector<8x128xf32>
    %32 = arith.addf %28, %31 : vector<8x128xf32>
    %cst_22 = arith.constant 0.000000e+00 : f32
    %33 = vector.broadcast %cst_22 : f32 to vector<8x128xf32>
    %34 = arith.maximumf %32, %33 : vector<8x128xf32>
    %35 = arith.truncf %34 : vector<8x128xf32> to vector<8x128xbf16>
    %c2 = arith.constant 2 : index
    %c0_23 = arith.constant 0 : index
    %c0_24 = arith.constant 0 : index
    %36 = vector.load %arg2[%c2, %c0_23, %c0_24] : memref<4x128x128xbf16, #tpu.memory_space<vmem>>, vector<1x128x128xbf16>
    %37 = vector.shape_cast %36 : vector<1x128x128xbf16> to vector<128x128xbf16>
    %cst_25 = arith.constant dense<0.000000e+00> : vector<8x128xf32>
    %38 = tpu.matmul %35, %37, %cst_25 {dimension_numbers = #tpu.dot_dimension_numbers<[1], [0], [0], [1], [0, 0, 1, 1], [], []>} : vector<8x128xbf16>, vector<128x128xbf16>, vector<8x128xf32> -> vector<8x128xf32>
    %c2_26 = arith.constant 2 : index
    %c0_27 = arith.constant 0 : index
    %c0_28 = arith.constant 0 : index
    %39 = vector.load %arg3[%c2_26, %c0_27, %c0_28] : memref<4x1x128xf32, #tpu.memory_space<vmem>>, vector<1x1x128xf32>
    %40 = vector.shape_cast %39 : vector<1x1x128xf32> to vector<1x128xf32>
    %41 = vector.broadcast %40 : vector<1x128xf32> to vector<8x128xf32>
    %42 = arith.addf %38, %41 : vector<8x128xf32>
    %cst_29 = arith.constant 0.000000e+00 : f32
    %43 = vector.broadcast %cst_29 : f32 to vector<8x128xf32>
    %44 = arith.maximumf %42, %43 : vector<8x128xf32>
    %45 = arith.truncf %44 : vector<8x128xf32> to vector<8x128xbf16>
    %c3 = arith.constant 3 : index
    %c0_30 = arith.constant 0 : index
    %c0_31 = arith.constant 0 : index
    %46 = vector.load %arg2[%c3, %c0_30, %c0_31] : memref<4x128x128xbf16, #tpu.memory_space<vmem>>, vector<1x128x128xbf16>
    %47 = vector.shape_cast %46 : vector<1x128x128xbf16> to vector<128x128xbf16>
    %cst_32 = arith.constant dense<0.000000e+00> : vector<8x128xf32>
    %48 = tpu.matmul %45, %47, %cst_32 {dimension_numbers = #tpu.dot_dimension_numbers<[1], [0], [0], [1], [0, 0, 1, 1], [], []>} : vector<8x128xbf16>, vector<128x128xbf16>, vector<8x128xf32> -> vector<8x128xf32>
    %c3_33 = arith.constant 3 : index
    %c0_34 = arith.constant 0 : index
    %c0_35 = arith.constant 0 : index
    %49 = vector.load %arg3[%c3_33, %c0_34, %c0_35] : memref<4x1x128xf32, #tpu.memory_space<vmem>>, vector<1x1x128xf32>
    %50 = vector.shape_cast %49 : vector<1x1x128xf32> to vector<1x128xf32>
    %51 = vector.broadcast %50 : vector<1x128xf32> to vector<8x128xf32>
    %52 = arith.addf %48, %51 : vector<8x128xf32>
    %53 = math.tanh %52 : vector<8x128xf32>
    %cst_36 = arith.constant 2.000000e+00 : f32
    %54 = vector.broadcast %cst_36 : f32 to vector<8x128xf32>
    %55 = arith.mulf %53, %54 : vector<8x128xf32>
    %c0_37 = arith.constant 0 : index
    %c0_38 = arith.constant 0 : index
    %56 = vector.load %arg4[%c0_37, %c0_38] : memref<8x128xf32, #tpu.memory_space<vmem>>, vector<8x128xf32>
    tpu.vector_store %arg4[%c0_37, %c0_38], %55 {strides = array<i32>} : memref<8x128xf32, #tpu.memory_space<vmem>>, vector<8x128xf32>,
    return
  }
}

</mosaic_0001>

<llo_original>
// kernel: species_actor_forward.1
$region0: #{species_actor_forward.1}
  #allocation0 [shape = 'u32[]', space=smem, size = 0x4, offset = 0x4, fixed_abs, tag = 'smem constant byte address 0x4 - core index']
  #allocation1 [shape = 'u32[144,128]{1,0:T(1,128)}', space=vmem, size = 0x12000, scoped, tag = 'internal scratch']
  %s0 = inlined_call_operand.vmem [shape: s32[8,1], index: 0, kind: input, shape index: {}]
  %s1 = inlined_call_operand.vmem [shape: f32[8,12], index: 1, kind: input, shape index: {}]
  %s2 = inlined_call_operand.hbm [shape: bf16[4,128,128], index: 2, kind: input, shape index: {}]
  %s3 = inlined_call_operand.vmem [shape: f32[4,1,128], index: 3, kind: input, shape index: {}]
  %s4 = inlined_call_operand.hbm [shape: f32[8,128], index: 4, kind: output, shape index: {}]
  %s5 = sld [smem:[#allocation0]]
  $region30: #{species_actor_forward.1} parent=0
    _
  %s7 = ssub.s32 1, %s5
  %s8 = scalar_select 0, %s7, %s5
  $region1: #{species_actor_forward.1} parent=0
    #allocation2 [shape = 'u8[131072]{0}', space=vmem, size = 0x20000, scoped, tag = 'input window, operand 2, single buffered']
    #allocation3 [shape = 's32[1]{0}', space=sflag, size = 0x4, scoped, tag = 'scoped memory for species_actor_forward.1']
    #allocation4 [shape = 's32[1]{0}', space=sflag, size = 0x4, scoped, tag = 'scoped memory for species_actor_forward.1']
    #allocation5 [shape = 'u8[4096]{0}', space=vmem, size = 0x1000, scoped, tag = 'output window, operand 0, single buffered']
    %9 = vsyncpa [#allocation3], 0
    %10 = vsyncpa [#allocation4], 0
    // Predicated region
    $region2: #{species_actor_forward.1} parent=1 // pred_check
      _
    $region3: #{species_actor_forward.1} parent=1 // pred_check_branch
      %12 = sbr.rel (0) target = $region5
    $region4: #{species_actor_forward.1} parent=1 // pred_region
      _
    $region5: #{species_actor_forward.1} parent=1 // pred_fallthru
      _
    // Predicated region
    $region6: #{species_actor_forward.1} parent=1 // pred_check
      _
    $region7: #{species_actor_forward.1} parent=1 // pred_check_branch
      %14 = sbr.rel (0) target = $region9
    $region8: #{species_actor_forward.1} parent=1 // pred_region
      _
    $region9: #{species_actor_forward.1} parent=1 // pred_fallthru
      _
    // Predicated region
    $region10: #{species_actor_forward.1} parent=1 // pred_check
      _
    $region11: #{species_actor_forward.1} parent=1 // pred_check_branch
      %16 = sbr.rel (0) target = $region13
    $region12: #{species_actor_forward.1} parent=1 // pred_region
      %s18 = ssub.s32 4096, 4096
      %19 = vsyncadd [#allocation3], %s18
      %s20 = sshll.u32 [#allocation2], 4
      %s21 = int_to_ptr.vmem [resolvable:$true] %s20
      %26 = dma.hbm_to_vmem [thread:$0]  %s2, 4096, %s21, [#allocation3], 64, 64, 4
    $region13: #{species_actor_forward.1} parent=1 // pred_fallthru
      _
    // Predicated region
    $region14: #{species_actor_forward.1} parent=1 // pred_check
      _
    $region15: #{species_actor_forward.1} parent=1 // pred_check_branch
      %28 = sbr.rel (0) target = $region17
    $region16: #{species_actor_forward.1} parent=1 // pred_region
      _
    $region17: #{species_actor_forward.1} parent=1 // pred_fallthru
      _
    // Predicated region
    $region18: #{species_actor_forward.1} parent=1 // pred_check
      _
    $region19: #{species_actor_forward.1} parent=1 // pred_check_branch
      %30 = sbr.rel (0) target = $region21
    $region20: #{species_actor_forward.1} parent=1 // pred_region
      %31 = dma.done [#allocation3], 4096
    $region21: #{species_actor_forward.1} parent=1 // pred_fallthru
      _
    %v33 = vld [vmem:[%s0] sm:$0xff]
    %v34 = vlaneseq
    %v35 = vand.u32 %v34, 127
    %v36 = vadd.s32 %v33, 12
    %37 = vset.pattern.permute.xlu0 0
    %38 = vperm.xlu0 %37, %v36
    %v39 = vpop.permute.xlu0 %38
    %vm40 = vcmp.eq.s32.totalorder %v35, %v39
    %v41 = vsel %vm40, 1.0, 0.0
    %v42 = vpack.c.bf16 %v41, %v41
    %v43 = vld [vmem:[%s1] sm:$0xff]
    %v44 = vpack.c.bf16 %v43, %v43
    %v45 = vld [vmem:[#allocation2] sm:$0xf]
    %v46 = vld [vmem:[#allocation2 + $0x4] sm:$0x3]
    %v47 = vld [vmem:[#allocation2 + $0x4] sm:$0xf]
    %v48 = vld [vmem:[#allocation2 + $0x8] sm:$0xf]
    %v49 = vld [vmem:[#allocation2 + $0xc] sm:$0xf]
    %v50 = vld [vmem:[#allocation2 + $0x10] sm:$0xf]
    %v51 = vld [vmem:[#allocation2 + $0x14] sm:$0xf]
    %v52 = vld [vmem:[#allocation2 + $0x18] sm:$0xf]
    %v53 = vld [vmem:[#allocation2 + $0x1c] sm:$0xf]
    %v54 = vld [vmem:[#allocation2 + $0x20] sm:$0xf]
    %v55 = vld [vmem:[#allocation2 + $0x24] sm:$0xf]
    %v56 = vld [vmem:[#allocation2 + $0x28] sm:$0xf]
    %v57 = vld [vmem:[#allocation2 + $0x2c] sm:$0xf]
    %v58 = vld [vmem:[#allocation2 + $0x30] sm:$0xf]
    %v59 = vld [vmem:[#allocation2 + $0x34] sm:$0xf]
    %v60 = vld [vmem:[#allocation2 + $0x38] sm:$0xf]
    %v61 = vld [vmem:[#allocation2 + $0x3c] sm:$0xf]
    %v78 = vunpack.c.l.b16 %v45
    %v79 = vunpack.c.l.b16 %v47
    %v80 = vunpack.c.l.b16 %v48
    %v81 = vunpack.c.l.b16 %v49
    %v82 = vunpack.c.l.b16 %v50
    %v83 = vunpack.c.l.b16 %v51
    %v84 = vunpack.c.l.b16 %v52
    %v85 = vunpack.c.l.b16 %v53
    %v86 = vunpack.c.l.b16 %v54
    %v87 = vunpack.c.l.b16 %v55
    %v88 = vunpack.c.l.b16 %v56
    %v89 = vunpack.c.l.b16 %v57
    %v90 = vunpack.c.l.b16 %v58
    %v91 = vunpack.c.l.b16 %v59
    %v92 = vunpack.c.l.b16 %v60
    %v93 = vunpack.c.l.b16 %v61
    %v94 = vpack.c.b16 %v79, %v78
    %v95 = vpack.c.b16 %v81, %v80
    %v96 = vpack.c.b16 %v83, %v82
    %v97 = vpack.c.b16 %v85, %v84
    %v98 = vpack.c.b16 %v87, %v86
    %v99 = vpack.c.b16 %v89, %v88
    %v100 = vpack.c.b16 %v91, %v90
    %v101 = vpack.c.b16 %v93, %v92
    %110 = vmatprep.subr.bf16.mxu0 0
    %111 = vmatpush1.bf16.msra.mxu0 %v94
    %112 = vmatprep.subr.bf16.mxu0 0
    %113 = vmatpush1.bf16.msra.mxu0 %v95
    %114 = vmatprep.subr.bf16.mxu0 0
    %115 = vmatpush1.bf16.msra.mxu0 %v96
    %116 = vmatprep.subr.bf16.mxu0 0
    %117 = vmatpush1.bf16.msra.mxu0 %v97
    %118 = vmatprep.subr.bf16.mxu0 0
    %119 = vmatpush1.bf16.msra.mxu0 %v98
    %120 = vmatprep.subr.bf16.mxu0 0
    %121 = vmatpush1.bf16.msra.mxu0 %v99
    %122 = vmatprep.subr.bf16.mxu0 0
    %123 = vmatpush1.bf16.msra.mxu0 %v100
    %124 = vmatprep.subr.bf16.mxu0 0
    %125 = vmatpush1.bf16.msra.mxu0 %v101
    %126 = vmatprep.subr.bf16.mxu0 0
    %127 = vmatpush1.bf16.msra.mxu0 0
    %128 = vmatprep.subr.bf16.mxu0 0
    %129 = vmatpush1.bf16.msra.mxu0 0
    %130 = vmatprep.subr.bf16.mxu0 0
    %131 = vmatpush1.bf16.msra.mxu0 0
    %132 = vmatprep.subr.bf16.mxu0 0
    %133 = vmatpush1.bf16.msra.mxu0 0
    %134 = vmatprep.subr.bf16.mxu0 0
    %135 = vmatpush1.bf16.msra.mxu0 0
    %136 = vmatprep.subr.bf16.mxu0 0
    %137 = vmatpush1.bf16.msra.mxu0 0
    %138 = vmatprep.subr.bf16.mxu0 0
    %139 = vmatpush1.bf16.msra.mxu0 0
    %140 = vmatprep.subr.bf16.mxu0 0
    %141 = vmatpush1.bf16.msra.mxu0 0
    %142 = vmatprep.mubr.bf16.mxu0 0
    %143 = vmatmul.mubr.bf16.gmra.mrb[0].mxu0 %v42
    %v144 = vpop.f32.mrb[0].mxu0
    %v145 = vadd.f32 0.0, %v144
    %v146 = vpop.f32.mrb[0].mxu0
    %v147 = vpop.f32.mrb[0].mxu0
    %v148 = vpop.f32.mrb[0].mxu0
    %149 = vdwg.mxu0
    %v151 = vunpack.c.l.b16 %v46
    %v152 = vpack.c.b16 %v151, %v78
    %vm153 = vcmask 97280
    %v155 = vsel %vm153, %v44, 0
    %vm157 = vcmask 1045504
    %v159 = vsel %vm157, %v152, 0
    %161 = vmatprep.subr.bf16.mxu0 0
    %162 = vmatpush1.bf16.msra.mxu0 %v159
    %163 = vmatprep.subr.bf16.mxu0 0
    %164 = vmatpush1.bf16.msra.mxu0 0
    %165 = vmatprep.subr.bf16.mxu0 0
    %166 = vmatpush1.bf16.msra.mxu0 0
    %167 = vmatprep.subr.bf16.mxu0 0
    %168 = vmatpush1.bf16.msra.mxu0 0
    %169 = vmatprep.subr.bf16.mxu0 0
    %170 = vmatpush1.bf16.msra.mxu0 0
    %171 = vmatprep.subr.bf16.mxu0 0
    %172 = vmatpush1.bf16.msra.mxu0 0
    %173 = vmatprep.subr.bf16.mxu0 0
    %174 = vmatpush1.bf16.msra.mxu0 0
    %175 = vmatprep.subr.bf16.mxu0 0
    %176 = vmatpush1.bf16.msra.mxu0 0
    %177 = vmatprep.subr.bf16.mxu0 0
    %178 = vmatpush1.bf16.msra.mxu0 0
    %179 = vmatprep.subr.bf16.mxu0 0
    %180 = vmatpush1.bf16.msra.mxu0 0
    %181 = vmatprep.subr.bf16.mxu0 0
    %182 = vmatpush1.bf16.msra.mxu0 0
    %183 = vmatprep.subr.bf16.mxu0 0
    %184 = vmatpush1.bf16.msra.mxu0 0
    %185 = vmatprep.subr.bf16.mxu0 0
    %186 = vmatpush1.bf16.msra.mxu0 0
    %187 = vmatprep.subr.bf16.mxu0 0
    %188 = vmatpush1.bf16.msra.mxu0 0
    %189 = vmatprep.subr.bf16.mxu0 0
    %190 = vmatpush1.bf16.msra.mxu0 0
    %191 = vmatprep.subr.bf16.mxu0 0
    %192 = vmatpush1.bf16.msra.mxu0 0
    %193 = vmatprep.mubr.bf16.mxu0 0
    %194 = vmatmul.mubr.bf16.gmra.mrb[0].mxu0 %v155
    %v195 = vpop.f32.mrb[0].mxu0
    %v196 = vadd.f32 %v145, %v195
    %v197 = vpop.f32.mrb[0].mxu0
    %v198 = vpop.f32.mrb[0].mxu0
    %v199 = vpop.f32.mrb[0].mxu0
    %200 = vdwg.mxu0
    %v201 = vld [vmem:[%s3] sm:$0x1]
    %v203 = vlaneseq
    %v204 = vshrl.u32 %v203, 7
    %v205 = vsub.s32 0, %v204
    %v206 = vrot.slane %v201, %v205
    %v208 = vadd.f32 %v196, %v206
    %v209 = vmax.f32 %v208, 0.0
    %v210 = vpack.c.bf16 %v209, %v209
    %s211 = scalar_lea.vmem [#allocation2], 64
    %v212 = vld [vmem:[%s211] sm:$0xf]
    %v213 = vld [vmem:[%s211 + $0x4] sm:$0xf]
    %v214 = vld [vmem:[%s211 + $0x8] sm:$0xf]
    %v215 = vld [vmem:[%s211 + $0xc] sm:$0xf]
    %v216 = vld [vmem:[%s211 + $0x10] sm:$0xf]
    %v217 = vld [vmem:[%s211 + $0x14] sm:$0xf]
    %v218 = vld [vmem:[%s211 + $0x18] sm:$0xf]
    %v219 = vld [vmem:[%s211 + $0x1c] sm:$0xf]
    %v220 = vld [vmem:[%s211 + $0x20] sm:$0xf]
    %v221 = vld [vmem:[%s211 + $0x24] sm:$0xf]
    %v222 = vld [vmem:[%s211 + $0x28] sm:$0xf]
    %v223 = vld [vmem:[%s211 + $0x2c] sm:$0xf]
    %v224 = vld [vmem:[%s211 + $0x30] sm:$0xf]
    %v225 = vld [vmem:[%s211 + $0x34] sm:$0xf]
    %v226 = vld [vmem:[%s211 + $0x38] sm:$0xf]
    %v227 = vld [vmem:[%s211 + $0x3c] sm:$0xf]
    %s228 = scalar_lea.vmem %s3, 1
    %v229 = vld [vmem:[%s228] sm:$0x1]
    %v231 = vlaneseq
    %v232 = vshrl.u32 %v231, 7
    %v233 = vsub.s32 0, %v232
    %v234 = vrot.slane %v229, %v233
    %v252 = vunpack.c.l.b16 %v212
    %v253 = vunpack.c.l.b16 %v213
    %v254 = vunpack.c.l.b16 %v214
    %v255 = vunpack.c.l.b16 %v215
    %v256 = vunpack.c.l.b16 %v216
    %v257 = vunpack.c.l.b16 %v217
    %v258 = vunpack.c.l.b16 %v218
    %v259 = vunpack.c.l.b16 %v219
    %v260 = vunpack.c.l.b16 %v220
    %v261 = vunpack.c.l.b16 %v221
    %v262 = vunpack.c.l.b16 %v222
    %v263 = vunpack.c.l.b16 %v223
    %v264 = vunpack.c.l.b16 %v224
    %v265 = vunpack.c.l.b16 %v225
    %v266 = vunpack.c.l.b16 %v226
    %v267 = vunpack.c.l.b16 %v227
    %v268 = vpack.c.b16 %v253, %v252
    %v269 = vpack.c.b16 %v255, %v254
    %v270 = vpack.c.b16 %v257, %v256
    %v271 = vpack.c.b16 %v259, %v258
    %v272 = vpack.c.b16 %v261, %v260
    %v273 = vpack.c.b16 %v263, %v262
    %v274 = vpack.c.b16 %v265, %v264
    %v275 = vpack.c.b16 %v267, %v266
    %284 = vmatprep.subr.bf16.mxu0 0
    %285 = vmatpush1.bf16.msra.mxu0 %v268
    %286 = vmatprep.subr.bf16.mxu0 0
    %287 = vmatpush1.bf16.msra.mxu0 %v269
    %288 = vmatprep.subr.bf16.mxu0 0
    %289 = vmatpush1.bf16.msra.mxu0 %v270
    %290 = vmatprep.subr.bf16.mxu0 0
    %291 = vmatpush1.bf16.msra.mxu0 %v271
    %292 = vmatprep.subr.bf16.mxu0 0
    %293 = vmatpush1.bf16.msra.mxu0 %v272
    %294 = vmatprep.subr.bf16.mxu0 0
    %295 = vmatpush1.bf16.msra.mxu0 %v273
    %296 = vmatprep.subr.bf16.mxu0 0
    %297 = vmatpush1.bf16.msra.mxu0 %v274
    %298 = vmatprep.subr.bf16.mxu0 0
    %299 = vmatpush1.bf16.msra.mxu0 %v275
    %300 = vmatprep.subr.bf16.mxu0 0
    %301 = vmatpush1.bf16.msra.mxu0 0
    %302 = vmatprep.subr.bf16.mxu0 0
    %303 = vmatpush1.bf16.msra.mxu0 0
    %304 = vmatprep.subr.bf16.mxu0 0
    %305 = vmatpush1.bf16.msra.mxu0 0
    %306 = vmatprep.subr.bf16.mxu0 0
    %307 = vmatpush1.bf16.msra.mxu0 0
    %308 = vmatprep.subr.bf16.mxu0 0
    %309 = vmatpush1.bf16.msra.mxu0 0
    %310 = vmatprep.subr.bf16.mxu0 0
    %311 = vmatpush1.bf16.msra.mxu0 0
    %312 = vmatprep.subr.bf16.mxu0 0
    %313 = vmatpush1.bf16.msra.mxu0 0
    %314 = vmatprep.subr.bf16.mxu0 0
    %315 = vmatpush1.bf16.msra.mxu0 0
    %316 = vmatprep.mubr.bf16.mxu0 0
    %317 = vmatmul.mubr.bf16.gmra.mrb[0].mxu0 %v210
    %v318 = vpop.f32.mrb[0].mxu0
    %v319 = vadd.f32 %v234, %v318
    %v320 = vpop.f32.mrb[0].mxu0
    %v321 = vpop.f32.mrb[0].mxu0
    %v322 = vpop.f32.mrb[0].mxu0
    %323 = vdwg.mxu0
    %v324 = vmax.f32 %v319, 0.0
    %v325 = vpack.c.bf16 %v324, %v324
    %s326 = scalar_lea.vmem [#allocation2], 128
    %v327 = vld [vmem:[%s326] sm:$0xf]
    %v328 = vld [vmem:[%s326 + $0x4] sm:$0xf]
    %v329 = vld [vmem:[%s326 + $0x8] sm:$0xf]
    %v330 = vld [vmem:[%s326 + $0xc] sm:$0xf]
    %v331 = vld [vmem:[%s326 + $0x10] sm:$0xf]
    %v332 = vld [vmem:[%s326 + $0x14] sm:$0xf]
    %v333 = vld [vmem:[%s326 + $0x18] sm:$0xf]
    %v334 = vld [vmem:[%s326 + $0x1c] sm:$0xf]
    %v335 = vld [vmem:[%s326 + $0x20] sm:$0xf]
    %v336 = vld [vmem:[%s326 + $0x24] sm:$0xf]
    %v337 = vld [vmem:[%s326 + $0x28] sm:$0xf]
    %v338 = vld [vmem:[%s326 + $0x2c] sm:$0xf]
    %v339 = vld [vmem:[%s326 + $0x30] sm:$0xf]
    %v340 = vld [vmem:[%s326 + $0x34] sm:$0xf]
    %v341 = vld [vmem:[%s326 + $0x38] sm:$0xf]
    %v342 = vld [vmem:[%s326 + $0x3c] sm:$0xf]
    %s343 = scalar_lea.vmem %s3, 2
    %v344 = vld [vmem:[%s343] sm:$0x1]
    %v346 = vlaneseq
    %v347 = vshrl.u32 %v346, 7
    %v348 = vsub.s32 0, %v347
    %v349 = vrot.slane %v344, %v348
    %v367 = vunpack.c.l.b16 %v327
    %v368 = vunpack.c.l.b16 %v328
    %v369 = vunpack.c.l.b16 %v329
    %v370 = vunpack.c.l.b16 %v330
    %v371 = vunpack.c.l.b16 %v331
    %v372 = vunpack.c.l.b16 %v332
    %v373 = vunpack.c.l.b16 %v333
    %v374 = vunpack.c.l.b16 %v334
    %v375 = vunpack.c.l.b16 %v335
    %v376 = vunpack.c.l.b16 %v336
    %v377 = vunpack.c.l.b16 %v337
    %v378 = vunpack.c.l.b16 %v338
    %v379 = vunpack.c.l.b16 %v339
    %v380 = vunpack.c.l.b16 %v340
    %v381 = vunpack.c.l.b16 %v341
    %v382 = vunpack.c.l.b16 %v342
    %v383 = vpack.c.b16 %v368, %v367
    %v384 = vpack.c.b16 %v370, %v369
    %v385 = vpack.c.b16 %v372, %v371
    %v386 = vpack.c.b16 %v374, %v373
    %v387 = vpack.c.b16 %v376, %v375
    %v388 = vpack.c.b16 %v378, %v377
    %v389 = vpack.c.b16 %v380, %v379
    %v390 = vpack.c.b16 %v382, %v381
    %399 = vmatprep.subr.bf16.mxu0 0
    %400 = vmatpush1.bf16.msra.mxu0 %v383
    %401 = vmatprep.subr.bf16.mxu0 0
    %402 = vmatpush1.bf16.msra.mxu0 %v384
    %403 = vmatprep.subr.bf16.mxu0 0
    %404 = vmatpush1.bf16.msra.mxu0 %v385
    %405 = vmatprep.subr.bf16.mxu0 0
    %406 = vmatpush1.bf16.msra.mxu0 %v386
    %407 = vmatprep.subr.bf16.mxu0 0
    %408 = vmatpush1.bf16.msra.mxu0 %v387
    %409 = vmatprep.subr.bf16.mxu0 0
    %410 = vmatpush1.bf16.msra.mxu0 %v388
    %411 = vmatprep.subr.bf16.mxu0 0
    %412 = vmatpush1.bf16.msra.mxu0 %v389
    %413 = vmatprep.subr.bf16.mxu0 0
    %414 = vmatpush1.bf16.msra.mxu0 %v390
    %415 = vmatprep.subr.bf16.mxu0 0
    %416 = vmatpush1.bf16.msra.mxu0 0
    %417 = vmatprep.subr.bf16.mxu0 0
    %418 = vmatpush1.bf16.msra.mxu0 0
    %419 = vmatprep.subr.bf16.mxu0 0
    %420 = vmatpush1.bf16.msra.mxu0 0
    %421 = vmatprep.subr.bf16.mxu0 0
    %422 = vmatpush1.bf16.msra.mxu0 0
    %423 = vmatprep.subr.bf16.mxu0 0
    %424 = vmatpush1.bf16.msra.mxu0 0
    %425 = vmatprep.subr.bf16.mxu0 0
    %426 = vmatpush1.bf16.msra.mxu0 0
    %427 = vmatprep.subr.bf16.mxu0 0
    %428 = vmatpush1.bf16.msra.mxu0 0
    %429 = vmatprep.subr.bf16.mxu0 0
    %430 = vmatpush1.bf16.msra.mxu0 0
    %431 = vmatprep.mubr.bf16.mxu0 0
    %432 = vmatmul.mubr.bf16.gmra.mrb[0].mxu0 %v325
    %v433 = vpop.f32.mrb[0].mxu0
    %v434 = vadd.f32 %v349, %v433
    %v435 = vpop.f32.mrb[0].mxu0
    %v436 = vpop.f32.mrb[0].mxu0
    %v437 = vpop.f32.mrb[0].mxu0
    %438 = vdwg.mxu0
    %v439 = vmax.f32 %v434, 0.0
    %v440 = vpack.c.bf16 %v439, %v439
    %s441 = scalar_lea.vmem [#allocation2], 192
    %v442 = vld [vmem:[%s441] sm:$0xf]
    %v443 = vld [vmem:[%s441 + $0x4] sm:$0xf]
    %v444 = vld [vmem:[%s441 + $0x8] sm:$0xf]
    %v445 = vld [vmem:[%s441 + $0xc] sm:$0xf]
    %v446 = vld [vmem:[%s441 + $0x10] sm:$0xf]
    %v447 = vld [vmem:[%s441 + $0x14] sm:$0xf]
    %v448 = vld [vmem:[%s441 + $0x18] sm:$0xf]
    %v449 = vld [vmem:[%s441 + $0x1c] sm:$0xf]
    %v450 = vld [vmem:[%s441 + $0x20] sm:$0xf]
    %v451 = vld [vmem:[%s441 + $0x24] sm:$0xf]
    %v452 = vld [vmem:[%s441 + $0x28] sm:$0xf]
    %v453 = vld [vmem:[%s441 + $0x2c] sm:$0xf]
    %v454 = vld [vmem:[%s441 + $0x30] sm:$0xf]
    %v455 = vld [vmem:[%s441 + $0x34] sm:$0xf]
    %v456 = vld [vmem:[%s441 + $0x38] sm:$0xf]
    %v457 = vld [vmem:[%s441 + $0x3c] sm:$0xf]
    %s458 = scalar_lea.vmem %s3, 3
    %v459 = vld [vmem:[%s458] sm:$0x1]
    %v461 = vlaneseq
    %v462 = vshrl.u32 %v461, 7
    %v463 = vsub.s32 0, %v462
    %v464 = vrot.slane %v459, %v463
    %v482 = vunpack.c.l.b16 %v442
    %v483 = vunpack.c.l.b16 %v443
    %v484 = vunpack.c.l.b16 %v444
    %v485 = vunpack.c.l.b16 %v445
    %v486 = vunpack.c.l.b16 %v446
    %v487 = vunpack.c.l.b16 %v447
    %v488 = vunpack.c.l.b16 %v448
    %v489 = vunpack.c.l.b16 %v449
    %v490 = vunpack.c.l.b16 %v450
    %v491 = vunpack.c.l.b16 %v451
    %v492 = vunpack.c.l.b16 %v452
    %v493 = vunpack.c.l.b16 %v453
    %v494 = vunpack.c.l.b16 %v454
    %v495 = vunpack.c.l.b16 %v455
    %v496 = vunpack.c.l.b16 %v456
    %v497 = vunpack.c.l.b16 %v457
    %v498 = vpack.c.b16 %v483, %v482
    %v499 = vpack.c.b16 %v485, %v484
    %v500 = vpack.c.b16 %v487, %v486
    %v501 = vpack.c.b16 %v489, %v488
    %v502 = vpack.c.b16 %v491, %v490
    %v503 = vpack.c.b16 %v493, %v492
    %v504 = vpack.c.b16 %v495, %v494
    %v505 = vpack.c.b16 %v497, %v496
    %514 = vmatprep.subr.bf16.mxu0 0
    %515 = vmatpush1.bf16.msra.mxu0 %v498
    %516 = vmatprep.subr.bf16.mxu0 0
    %517 = vmatpush1.bf16.msra.mxu0 %v499
    %518 = vmatprep.subr.bf16.mxu0 0
    %519 = vmatpush1.bf16.msra.mxu0 %v500
    %520 = vmatprep.subr.bf16.mxu0 0
    %521 = vmatpush1.bf16.msra.mxu0 %v501
    %522 = vmatprep.subr.bf16.mxu0 0
    %523 = vmatpush1.bf16.msra.mxu0 %v502
    %524 = vmatprep.subr.bf16.mxu0 0
    %525 = vmatpush1.bf16.msra.mxu0 %v503
    %526 = vmatprep.subr.bf16.mxu0 0
    %527 = vmatpush1.bf16.msra.mxu0 %v504
    %528 = vmatprep.subr.bf16.mxu0 0
    %529 = vmatpush1.bf16.msra.mxu0 %v505
    %530 = vmatprep.subr.bf16.mxu0 0
    %531 = vmatpush1.bf16.msra.mxu0 0
    %532 = vmatprep.subr.bf16.mxu0 0
    %533 = vmatpush1.bf16.msra.mxu0 0
    %534 = vmatprep.subr.bf16.mxu0 0
    %535 = vmatpush1.bf16.msra.mxu0 0
    %536 = vmatprep.subr.bf16.mxu0 0
    %537 = vmatpush1.bf16.msra.mxu0 0
    %538 = vmatprep.subr.bf16.mxu0 0
    %539 = vmatpush1.bf16.msra.mxu0 0
    %540 = vmatprep.subr.bf16.mxu0 0
    %541 = vmatpush1.bf16.msra.mxu0 0
    %542 = vmatprep.subr.bf16.mxu0 0
    %543 = vmatpush1.bf16.msra.mxu0 0
    %544 = vmatprep.subr.bf16.mxu0 0
    %545 = vmatpush1.bf16.msra.mxu0 0
    %546 = vmatprep.mubr.bf16.mxu0 0
    %547 = vmatmul.mubr.bf16.gmra.mrb[0].mxu0 %v440
    %v548 = vpop.f32.mrb[0].mxu0
    %v549 = vadd.f32 %v464, %v548
    %v550 = vpop.f32.mrb[0].mxu0
    %v551 = vpop.f32.mrb[0].mxu0
    %v552 = vpop.f32.mrb[0].mxu0
    %553 = vdwg.mxu0
    %v554 = vtanh.pop %v549
    %v555 = vmul.f32 %v554, 2.0
    %556 = vst [vmem:[#allocation5] sm:$0xff] %v555
    // Predicated region
    $region22: #{species_actor_forward.1} parent=1 // pred_check
      _
    $region23: #{species_actor_forward.1} parent=1 // pred_check_branch
      %558 = sbr.rel (0) target = $region25
    $region24: #{species_actor_forward.1} parent=1 // pred_region
      %s560 = ssub.s32 128, 128
      %561 = vsyncadd [#allocation4], %s560
      %s563 = sshll.u32 [#allocation5], 4
      %s564 = int_to_ptr.vmem [resolvable:$true] %s563
      %566 = dma.vmem_to_hbm [thread:$0]  %s564, 128, %s4, [#allocation4]
    $region25: #{species_actor_forward.1} parent=1 // pred_fallthru
      _
    // Predicated region
    $region26: #{species_actor_forward.1} parent=1 // pred_check
      _
    $region27: #{species_actor_forward.1} parent=1 // pred_check_branch
      %568 = sbr.rel (0) target = $region29
    $region28: #{species_actor_forward.1} parent=1 // pred_region
      %569 = dma.done [#allocation4], 128
    $region29: #{species_actor_forward.1} parent=1 // pred_fallthru
      _
    %570 = vsyncpa [#allocation3], 1
    %571 = vsyncpa [#allocation4], 1

</llo_original>
